<compile_context>
chip_gen: v6e
topology: v6e:2x2x1
jax: 0.10.0
libtpu: 0.0.40
codegen_flags: <defaults>
</compile_context>

<pallas_src>
import jax
import jax.numpy as jnp
import numpy as np
from jax.experimental import pallas as pl
from jax.experimental.pallas import tpu as pltpu


def _round_up(x: int, m: int) -> int:
    return ((x + m - 1) // m) * m


def _lane_pad(n: int) -> int:
    # 128-lane alignment is mandatory; >128 pads to 256 for the v6e/v7x MXU width.
    return _round_up(n, 128) if n <= 128 else _round_up(n, 256)


def rnn_recurrence_kernel(xproj_ref, h0_ref, whh_ref, out_ref, h_ref):
    # xproj_ref: (Tc, B_p, H_p)  precomputed x_t @ W_ih + (b_i + b_h) for this chunk
    # h0_ref:    (B_p, H_p)      initial hidden state (resident, constant block)
    # whh_ref:   (H_p, H_p)      recurrent weight (resident, constant block)
    # out_ref:   (Tc, B_p, H_p)  hidden states emitted for this chunk
    # h_ref:     (B_p, H_p)      VMEM scratch carrying h across grid chunks
    c = pl.program_id(0)

    @pl.when(c == 0)
    def _init():
        h_ref[...] = h0_ref[...]

    w = whh_ref[...]            # loaded once per chunk; DMA'd once for whole grid
    h = h_ref[...]              # chunk-boundary load; carried in vregs below
    tc = xproj_ref.shape[0]     # static

    def step(t, h_carry):
        pre = xproj_ref[t] + jnp.dot(h_carry, w,
                                     preferred_element_type=jnp.float32)
        h_new = jnp.tanh(pre)
        out_ref[t] = h_new.astype(out_ref.dtype)
        return h_new

    h = jax.lax.fori_loop(0, tc, step, h, unroll=True)
    h_ref[...] = h              # carry hidden state to the next chunk


def rnn_sequence(xs, h0, W_ih, W_hh, b_i, b_h, *, time_chunk=8):
    """Run T RNN steps. xs: (T, B, I), h0: (B, H) -> (T, B, H)."""
    T, B, I = xs.shape
    H = W_ih.shape[1]
    assert h0.shape == (B, H)
    assert W_ih.shape == (I, H) and W_hh.shape == (H, H)
    assert b_i.shape == (H,) and b_h.shape == (H,)

    f32 = jnp.float32

    # --- (1) Hoisted, time-parallel input projection: one big GEMM in XLA. ---
    # Padding of xs is never materialized; only the (smaller) projection is padded.
    xproj = jnp.einsum(
        "tbi,ih->tbh", xs.astype(f32), W_ih.astype(f32),
        precision=jax.lax.Precision.HIGHEST,
    ) + (b_i + b_h).astype(f32)

    # --- Padded / tiled sizes. ---
    B_p = _round_up(B, 8)          # sublane multiple
    H_p = _lane_pad(H)             # lane multiple (256-aligned when H > 128)
    Tc = max(1, min(time_chunk, T))
    T_p = _round_up(T, Tc)

    # Zero padding is self-consistent: padded lanes/rows of xproj, W_hh and h0 are 0,
    # and tanh(0) = 0, so padded hidden lanes stay exactly 0 across all steps.
    xproj_p = jnp.zeros((T_p, B_p, H_p), f32).at[:T, :B, :H].set(xproj)
    h0_p = jnp.zeros((B_p, H_p), f32).at[:B, :H].set(h0.astype(f32))
    Whh_p = jnp.zeros((H_p, H_p), f32).at[:H, :H].set(W_hh.astype(f32))

    # --- Explicit VMEM budget (double-buffered I/O blocks + resident + scratch). ---
    blk_bytes = Tc * B_p * H_p * 4
    resident_bytes = (B_p * H_p + H_p * H_p) * 4
    scratch_bytes = B_p * H_p * 4
    footprint = 2 * blk_bytes + 2 * blk_bytes + 2 * resident_bytes + scratch_bytes
    vmem_limit = int(min(64 << 20, max(4 << 20, 2 * footprint)))

    hs_p = pl.pallas_call(
        rnn_recurrence_kernel,
        out_shape=jax.ShapeDtypeStruct((T_p, B_p, H_p), f32),
        grid_spec=pltpu.PrefetchScalarGridSpec(
            num_scalar_prefetch=0,
            grid=(T_p // Tc,),
            in_specs=[
                # Per-chunk projected inputs (pipelined across chunks).
                pl.BlockSpec((Tc, B_p, H_p), lambda c: (c, 0, 0)),
                # Resident blocks (constant index_map -> DMA'd once).
                pl.BlockSpec((B_p, H_p), lambda c: (0, 0)),
                pl.BlockSpec((H_p, H_p), lambda c: (0, 0)),
            ],
            out_specs=pl.BlockSpec((Tc, B_p, H_p), lambda c: (c, 0, 0)),
            scratch_shapes=[pltpu.VMEM((B_p, H_p), f32)],
        ),
        compiler_params=pltpu.CompilerParams(
            # Time axis is a serial recurrence (h carried in scratch).
            dimension_semantics=("arbitrary",),
            vmem_limit_bytes=vmem_limit,
        ),
    )(xproj_p, h0_p, Whh_p)

    return hs_p[:T, :B, :H].astype(xs.dtype)


def rnn_cell(x_t, h, W_ih, W_hh, b_i, b_h):
    """Exact equivalent of the module forward (a single step): T == 1 case."""
    return rnn_sequence(x_t[None], h, W_ih, W_hh, b_i, b_h)[0]


if __name__ == "__main__":
    # Small sizes consistent with the module: batch=2, input=16, hidden=32;
    # an 8-step sequence exercises the chunked in-kernel time loop.
    B, I, H, T = 2, 16, 32, 8

    key = jax.random.PRNGKey(0)
    k_x, k_h, k_wih, k_whh, k_bi, k_bh = jax.random.split(key, 6)

    xs = jax.random.normal(k_x, (T, B, I), dtype=jnp.float32)
    h0 = jax.random.normal(k_h, (B, H), dtype=jnp.float32)

    W_ih = jax.random.normal(k_wih, (I, H), dtype=jnp.float32)
    W_hh = jax.random.normal(k_whh, (H, H), dtype=jnp.float32)
    b_i = jax.random.normal(k_bi, (H,), dtype=jnp.float32)
    b_h = jax.random.normal(k_bh, (H,), dtype=jnp.float32)

    # --- Single-step (exact module forward semantics) ---
    out_step = jax.block_until_ready(rnn_cell(xs[0], h0, W_ih, W_hh, b_i, b_h))

    # --- Full sequence in one kernel ---
    out_seq = jax.block_until_ready(rnn_sequence(xs, h0, W_ih, W_hh, b_i, b_h))

    # Reference (host numpy, exact f32 math).  Note: bias is folded into the
    # hoisted projection, so FP summation order differs slightly from PyTorch's
    # left-to-right evaluation; tolerance reflects that.
    xs_n, h_n = np.asarray(xs), np.asarray(h0)
    Wih_n, Whh_n = np.asarray(W_ih), np.asarray(W_hh)
    bi_n, bh_n = np.asarray(b_i), np.asarray(b_h)

    ref_step = np.tanh(xs_n[0] @ Wih_n + bi_n + h_n @ Whh_n + bh_n)

    ref_seq = np.zeros((T, B, H), dtype=np.float32)
    h_cur = h_n
    for t in range(T):
        h_cur = np.tanh(xs_n[t] @ Wih_n + bi_n + h_cur @ Whh_n + bh_n)
        ref_seq[t] = h_cur

    assert out_step.shape == (B, H)
    assert out_seq.shape == (T, B, H)
    np.testing.assert_allclose(np.asarray(out_step), ref_step, atol=2e-3, rtol=2e-3)
    np.testing.assert_allclose(np.asarray(out_seq), ref_seq, atol=2e-3, rtol=2e-3)

    print("KERNEL_OK")
</pallas_src>

<mosaic_0001>
module attributes {stable_mosaic.version = 11 : i64} {
  func.func @rnn_recurrence_kernel(%arg0: i32, %arg1: memref<1x8x128xf32, #tpu.memory_space<vmem>>, %arg2: memref<8x128xf32, #tpu.memory_space<vmem>>, %arg3: memref<128x128xf32, #tpu.memory_space<vmem>>, %arg4: memref<1x8x128xf32, #tpu.memory_space<vmem>>, %arg5: memref<8x128xf32, #tpu.memory_space<vmem>>) attributes {dimension_semantics = [#tpu.dimension_semantics<arbitrary>], iteration_bounds = array<i64: 1>, scalar_prefetch = 0 : i64, scratch_operands = 1 : i64, tpu.core_type = #tpu.core_type<tc>, window_params = [{transform_indices = @transform_0, window_bounds = array<i64: 1, 8, 128>}, {pipeline_mode = #tpu.pipeline_mode<synchronous>, transform_indices = @transform_1, window_bounds = array<i64: 8, 128>}, {pipeline_mode = #tpu.pipeline_mode<synchronous>, transform_indices = @transform_2, window_bounds = array<i64: 128, 128>}, {transform_indices = @transform_3, window_bounds = array<i64: 1, 8, 128>}]} {
    %c0_i32 = arith.constant 0 : i32
    %0 = arith.cmpi eq, %arg0, %c0_i32 : i32
    %1 = arith.extui %0 : i1 to i32
    %c0_i32_0 = arith.constant 0 : i32
    %2 = arith.cmpi ne, %1, %c0_i32_0 : i32
    scf.if %2 {
      %c0_11 = arith.constant 0 : index
      %c0_12 = arith.constant 0 : index
      %16 = vector.load %arg2[%c0_11, %c0_12] : memref<8x128xf32, #tpu.memory_space<vmem>>, vector<8x128xf32>
      %c0_13 = arith.constant 0 : index
      %c0_14 = arith.constant 0 : index
      %17 = vector.load %arg5[%c0_13, %c0_14] : memref<8x128xf32, #tpu.memory_space<vmem>>, vector<8x128xf32>
      tpu.vector_store %arg5[%c0_13, %c0_14], %16 {strides = array<i32>} : memref<8x128xf32, #tpu.memory_space<vmem>>, vector<8x128xf32>,
    } else {
    }
    %c0 = arith.constant 0 : index
    %c0_1 = arith.constant 0 : index
    %3 = vector.load %arg3[%c0, %c0_1] : memref<128x128xf32, #tpu.memory_space<vmem>>, vector<128x128xf32>
    %c0_2 = arith.constant 0 : index
    %c0_3 = arith.constant 0 : index
    %4 = vector.load %arg5[%c0_2, %c0_3] : memref<8x128xf32, #tpu.memory_space<vmem>>, vector<8x128xf32>
    %c0_i32_4 = arith.constant 0 : i32
    %5 = arith.index_cast %c0_i32_4 : i32 to index
    %c0_5 = arith.constant 0 : index
    %c0_6 = arith.constant 0 : index
    %6 = vector.load %arg1[%5, %c0_5, %c0_6] : memref<1x8x128xf32, #tpu.memory_space<vmem>>, vector<1x8x128xf32>
    %7 = vector.shape_cast %6 : vector<1x8x128xf32> to vector<8x128xf32>
    %cst = arith.constant dense<0.000000e+00> : vector<8x128xf32>
    %8 = tpu.matmul %4, %3, %cst {dimension_numbers = #tpu.dot_dimension_numbers<[1], [0], [0], [1], [0, 0, 1, 1], [], []>} : vector<8x128xf32>, vector<128x128xf32>, vector<8x128xf32> -> vector<8x128xf32>
    %9 = arith.addf %7, %8 : vector<8x128xf32>
    %10 = math.tanh %9 : vector<8x128xf32>
    %11 = arith.index_cast %c0_i32_4 : i32 to index
    %c0_7 = arith.constant 0 : index
    %c0_8 = arith.constant 0 : index
    %12 = vector.load %arg4[%11, %c0_7, %c0_8] : memref<1x8x128xf32, #tpu.memory_space<vmem>>, vector<1x8x128xf32>
    %13 = vector.shape_cast %12 : vector<1x8x128xf32> to vector<8x128xf32>
    %14 = vector.shape_cast %10 : vector<8x128xf32> to vector<1x8x128xf32>
    tpu.vector_store %arg4[%11, %c0_7, %c0_8], %14 {strides = array<i32>} : memref<1x8x128xf32, #tpu.memory_space<vmem>>, vector<1x8x128xf32>,
    %c1_i32 = arith.constant 1 : i32
    %c0_9 = arith.constant 0 : index
    %c0_10 = arith.constant 0 : index
    %15 = vector.load %arg5[%c0_9, %c0_10] : memref<8x128xf32, #tpu.memory_space<vmem>>, vector<8x128xf32>
    tpu.vector_store %arg5[%c0_9, %c0_10], %10 {strides = array<i32>} : memref<8x128xf32, #tpu.memory_space<vmem>>, vector<8x128xf32>,
    return
  }
  func.func @transform_0(%arg0: i32) -> (i32, i32, i32) {
    %c0_i32 = arith.constant 0 : i32
    %c0_i32_0 = arith.constant 0 : i32
    %c0_i32_1 = arith.constant 0 : i32
    return %arg0, %c0_i32, %c0_i32_0 : i32, i32, i32
  }
  func.func @transform_1(%arg0: i32) -> (i32, i32) {
    %c0_i32 = arith.constant 0 : i32
    %c0_i32_0 = arith.constant 0 : i32
    %c0_i32_1 = arith.constant 0 : i32
    return %c0_i32, %c0_i32_0 : i32, i32
  }
  func.func @transform_2(%arg0: i32) -> (i32, i32) {
    %c0_i32 = arith.constant 0 : i32
    %c0_i32_0 = arith.constant 0 : i32
    %c0_i32_1 = arith.constant 0 : i32
    return %c0_i32, %c0_i32_0 : i32, i32
  }
  func.func @transform_3(%arg0: i32) -> (i32, i32, i32) {
    %c0_i32 = arith.constant 0 : i32
    %c0_i32_0 = arith.constant 0 : i32
    %c0_i32_1 = arith.constant 0 : i32
    return %arg0, %c0_i32, %c0_i32_0 : i32, i32, i32
  }
}

</mosaic_0001>

<llo_original>
// kernel: tpu_custom_call.1
$region0: #{tpu_custom_call.1}
  #allocation0 [shape = 'u32[]', space=smem, size = 0x4, offset = 0x4, fixed_abs, tag = 'smem constant byte address 0x4 - core index']
  #allocation1 [shape = 'u32[144,128]{1,0:T(1,128)}', space=vmem, size = 0x12000, scoped, tag = 'internal scratch']
  #allocation2 [shape = 'f32[8,128]{1,0:T(8,128)}', space=vmem, size = 0x1000, scoped, tag = 'scratch operand']
  %s0 = inlined_call_operand.hbm [shape: f32[1,8,128], index: 0, kind: input, shape index: {}]
  %s1 = inlined_call_operand.hbm [shape: f32[8,128], index: 1, kind: input, shape index: {}]
  %s2 = inlined_call_operand.hbm [shape: f32[128,128], index: 2, kind: input, shape index: {}]
  %s3 = inlined_call_operand.hbm [shape: f32[1,8,128], index: 3, kind: output, shape index: {}]
  %s4 = sld [smem:[#allocation0]]
  $region38: #{tpu_custom_call.1} parent=0
    _
  %s6 = ssub.s32 1, %s4
  %s7 = scalar_select 0, %s6, %s4
  $region1: #{tpu_custom_call.1} parent=0
    #allocation3 [shape = 'u8[4096]{0}', space=vmem, size = 0x1000, scoped, tag = 'input window, operand 0, single buffered']
    #allocation4 [shape = 's32[1]{0}', space=sflag, size = 0x4, scoped, tag = 'scoped memory for tpu_custom_call.1']
    #allocation5 [shape = 's32[1]{0}', space=sflag, size = 0x4, scoped, tag = 'scoped memory for tpu_custom_call.1']
    #allocation6 [shape = 'u8[4096]{0}', space=vmem, size = 0x1000, scoped, tag = 'input window, operand 1, single buffered']
    #allocation7 [shape = 's32[1]{0}', space=sflag, size = 0x4, scoped, tag = 'scoped memory for tpu_custom_call.1']
    #allocation8 [shape = 'u8[65536]{0}', space=vmem, size = 0x10000, scoped, tag = 'input window, operand 2, single buffered']
    #allocation9 [shape = 'u8[4096]{0}', space=vmem, size = 0x1000, scoped, tag = 'output window, operand 0, single buffered']
    %8 = vsyncpa [#allocation4], 0
    %9 = vsyncpa [#allocation7], 0
    %10 = vsyncpa [#allocation5], 0
    // Predicated region
    $region2: #{tpu_custom_call.1} parent=1 // pred_check
      _
    $region3: #{tpu_custom_call.1} parent=1 // pred_check_branch
      %12 = sbr.rel (0) target = $region5
    $region4: #{tpu_custom_call.1} parent=1 // pred_region
      %s14 = ssub.s32 128, 128
      %15 = vsyncadd [#allocation4], %s14
      %s17 = sshll.u32 [#allocation3], 4
      %s18 = int_to_ptr.vmem [resolvable:$true] %s17
      %20 = dma.hbm_to_vmem [thread:$0]  %s0, 128, %s18, [#allocation4]
    $region5: #{tpu_custom_call.1} parent=1 // pred_fallthru
      _
    // Predicated region
    $region6: #{tpu_custom_call.1} parent=1 // pred_check
      _
    $region7: #{tpu_custom_call.1} parent=1 // pred_check_branch
      %22 = sbr.rel (0) target = $region9
    $region8: #{tpu_custom_call.1} parent=1 // pred_region
      %s24 = ssub.s32 128, 128
      %25 = vsyncadd [#allocation7], %s24
      %s27 = sshll.u32 [#allocation6], 4
      %s28 = int_to_ptr.vmem [resolvable:$true] %s27
      %30 = dma.hbm_to_vmem [thread:$0]  %s1, 128, %s28, [#allocation7]
    $region9: #{tpu_custom_call.1} parent=1 // pred_fallthru
      _
    // Predicated region
    $region10: #{tpu_custom_call.1} parent=1 // pred_check
      _
    $region11: #{tpu_custom_call.1} parent=1 // pred_check_branch
      %32 = sbr.rel (0) target = $region13
    $region12: #{tpu_custom_call.1} parent=1 // pred_region
      %s34 = ssub.s32 2048, 2048
      %35 = vsyncadd [#allocation7], %s34
      %s36 = sshll.u32 [#allocation8], 4
      %s37 = int_to_ptr.vmem [resolvable:$true] %s36
      %42 = dma.hbm_to_vmem [thread:$0]  %s2, 2048, %s37, [#allocation7], 128, 128, 8
    $region13: #{tpu_custom_call.1} parent=1 // pred_fallthru
      _
    // Predicated region
    $region14: #{tpu_custom_call.1} parent=1 // pred_check
      _
    $region15: #{tpu_custom_call.1} parent=1 // pred_check_branch
      %44 = sbr.rel (0) target = $region17
    $region16: #{tpu_custom_call.1} parent=1 // pred_region
      %45 = dma.done [#allocation4], 128
    $region17: #{tpu_custom_call.1} parent=1 // pred_fallthru
      _
    // Predicated region
    $region18: #{tpu_custom_call.1} parent=1 // pred_check
      _
    $region19: #{tpu_custom_call.1} parent=1 // pred_check_branch
      %47 = sbr.rel (0) target = $region21
    $region20: #{tpu_custom_call.1} parent=1 // pred_region
      %48 = dma.done [#allocation7], 128
    $region21: #{tpu_custom_call.1} parent=1 // pred_fallthru
      _
    // Predicated region
    $region22: #{tpu_custom_call.1} parent=1 // pred_check
      _
    $region23: #{tpu_custom_call.1} parent=1 // pred_check_branch
      %50 = sbr.rel (0) target = $region25
    $region24: #{tpu_custom_call.1} parent=1 // pred_region
      %51 = dma.done [#allocation7], 2048
    $region25: #{tpu_custom_call.1} parent=1 // pred_fallthru
      _
    %p52 = scmp.eq.s32.totalorder 0, 0
    // Predicated region
    $region26: #{tpu_custom_call.1} parent=1 // pred_check
      %p53 = pneg %p52
    $region27: #{tpu_custom_call.1} parent=1 // pred_check_branch
      %55 = sbr.rel (%p53) target = $region29
    $region28: #{tpu_custom_call.1} parent=1 // pred_region
      %v56 = vld [vmem:[#allocation6] sm:$0xff]
      %57 = vst [vmem:[#allocation2] sm:$0xff] %v56
    $region29: #{tpu_custom_call.1} parent=1 // pred_fallthru
      _
    %v58 = vld [vmem:[#allocation8] sm:$0xff]
    %v59 = vld [vmem:[#allocation8 + $0x8] sm:$0xff]
    %v60 = vld [vmem:[#allocation8 + $0x10] sm:$0xff]
    %v61 = vld [vmem:[#allocation8 + $0x18] sm:$0xff]
    %v62 = vld [vmem:[#allocation8 + $0x20] sm:$0xff]
    %v63 = vld [vmem:[#allocation8 + $0x28] sm:$0xff]
    %v64 = vld [vmem:[#allocation8 + $0x30] sm:$0xff]
    %v65 = vld [vmem:[#allocation8 + $0x38] sm:$0xff]
    %v66 = vld [vmem:[#allocation8 + $0x40] sm:$0xff]
    %v67 = vld [vmem:[#allocation8 + $0x48] sm:$0xff]
    %v68 = vld [vmem:[#allocation8 + $0x50] sm:$0xff]
    %v69 = vld [vmem:[#allocation8 + $0x58] sm:$0xff]
    %v70 = vld [vmem:[#allocation8 + $0x60] sm:$0xff]
    %v71 = vld [vmem:[#allocation8 + $0x68] sm:$0xff]
    %v72 = vld [vmem:[#allocation8 + $0x70] sm:$0xff]
    %v73 = vld [vmem:[#allocation8 + $0x78] sm:$0xff]
    %v74 = vld [vmem:[#allocation2] sm:$0xff]
    %v75 = vld [vmem:[#allocation3] sm:$0xff]
    %76 = vmatprep.subr.mxu0 0.0
    %77 = vmatpush1.msra.mxu0 %v73
    %78 = vmatprep.subr.mxu0 0.0
    %79 = vmatpush1.msra.mxu0 %v72
    %80 = vmatprep.subr.mxu0 0.0
    %81 = vmatpush1.msra.mxu0 %v71
    %82 = vmatprep.subr.mxu0 0.0
    %83 = vmatpush1.msra.mxu0 %v70
    %84 = vmatprep.subr.mxu0 0.0
    %85 = vmatpush1.msra.mxu0 %v69
    %86 = vmatprep.subr.mxu0 0.0
    %87 = vmatpush1.msra.mxu0 %v68
    %88 = vmatprep.subr.mxu0 0.0
    %89 = vmatpush1.msra.mxu0 %v67
    %90 = vmatprep.subr.mxu0 0.0
    %91 = vmatpush1.msra.mxu0 %v66
    %92 = vmatprep.subr.mxu0 0.0
    %93 = vmatpush1.msra.mxu0 %v65
    %94 = vmatprep.subr.mxu0 0.0
    %95 = vmatpush1.msra.mxu0 %v64
    %96 = vmatprep.subr.mxu0 0.0
    %97 = vmatpush1.msra.mxu0 %v63
    %98 = vmatprep.subr.mxu0 0.0
    %99 = vmatpush1.msra.mxu0 %v62
    %100 = vmatprep.subr.mxu0 0.0
    %101 = vmatpush1.msra.mxu0 %v61
    %102 = vmatprep.subr.mxu0 0.0
    %103 = vmatpush1.msra.mxu0 %v60
    %104 = vmatprep.subr.mxu0 0.0
    %105 = vmatpush1.msra.mxu0 %v59
    %106 = vmatprep.subr.mxu0 0.0
    %107 = vmatpush1.msra.mxu0 %v58
    %108 = vmatprep.subr.mxu0 0.0
    %109 = vmatpush2.msra.mxu0 0.0
    %110 = vmatprep.subr.mxu0 0.0
    %111 = vmatpush2.msra.mxu0 0.0
    %112 = vmatprep.subr.mxu0 0.0
    %113 = vmatpush2.msra.mxu0 0.0
    %114 = vmatprep.subr.mxu0 0.0
    %115 = vmatpush2.msra.mxu0 0.0
    %116 = vmatprep.subr.mxu0 0.0
    %117 = vmatpush2.msra.mxu0 0.0
    %118 = vmatprep.subr.mxu0 0.0
    %119 = vmatpush2.msra.mxu0 0.0
    %120 = vmatprep.subr.mxu0 0.0
    %121 = vmatpush2.msra.mxu0 0.0
    %122 = vmatprep.subr.mxu0 0.0
    %123 = vmatpush2.msra.mxu0 0.0
    %124 = vmatprep.subr.mxu0 0.0
    %125 = vmatpush2.msra.mxu0 0.0
    %126 = vmatprep.subr.mxu0 0.0
    %127 = vmatpush2.msra.mxu0 0.0
    %128 = vmatprep.subr.mxu0 0.0
    %129 = vmatpush2.msra.mxu0 0.0
    %130 = vmatprep.subr.mxu0 0.0
    %131 = vmatpush2.msra.mxu0 0.0
    %132 = vmatprep.subr.mxu0 0.0
    %133 = vmatpush2.msra.mxu0 0.0
    %134 = vmatprep.subr.mxu0 0.0
    %135 = vmatpush2.msra.mxu0 0.0
    %136 = vmatprep.subr.mxu0 0.0
    %137 = vmatpush2.msra.mxu0 0.0
    %138 = vmatprep.subr.mxu0 0.0
    %139 = vmatpush2.msra.mxu0 0.0
    %140 = vmatprep.mubr.f32.mxu0 0.0
    %141 = vmatmul.mubr.f32.gmra.mxu0 %v74
    %v142 = vpop.f32.mrf.mxu0
    %v143 = vadd.f32 0.0, %v142
    %v144 = vpop.f32.mrf.mxu0
    %145 = vdwg.mxu0
    %v146 = vadd.f32 %v75, %v143
    %v147 = vtanh.pop %v146
    %148 = vst [vmem:[#allocation9] sm:$0xff] %v147
    %149 = vst [vmem:[#allocation2] sm:$0xff] %v147
    // Predicated region
    $region30: #{tpu_custom_call.1} parent=1 // pred_check
      _
    $region31: #{tpu_custom_call.1} parent=1 // pred_check_branch
      %151 = sbr.rel (0) target = $region33
    $region32: #{tpu_custom_call.1} parent=1 // pred_region
      %s153 = ssub.s32 128, 128
      %154 = vsyncadd [#allocation5], %s153
      %s156 = sshll.u32 [#allocation9], 4
      %s157 = int_to_ptr.vmem [resolvable:$true] %s156
      %159 = dma.vmem_to_hbm [thread:$0]  %s157, 128, %s3, [#allocation5]
    $region33: #{tpu_custom_call.1} parent=1 // pred_fallthru
      _
    // Predicated region
    $region34: #{tpu_custom_call.1} parent=1 // pred_check
      _
    $region35: #{tpu_custom_call.1} parent=1 // pred_check_branch
      %161 = sbr.rel (0) target = $region37
    $region36: #{tpu_custom_call.1} parent=1 // pred_region
      %162 = dma.done [#allocation5], 128
    $region37: #{tpu_custom_call.1} parent=1 // pred_fallthru
      _
    %163 = vsyncpa [#allocation4], 1
    %164 = vsyncpa [#allocation7], 1
    %165 = vsyncpa [#allocation5], 1

</llo_original>
